<compile_context>
chip_gen: v7x
topology: tpu7x:2x2x1
jax: 0.10.0
libtpu: 0.0.40
codegen_flags: <defaults>
</compile_context>

<pallas_src>
import jax
import jax.numpy as jnp
from jax.experimental import pallas as pl
from jax.experimental.pallas import tpu as pltpu

EPS = 1e-5
LANE = 128


def _round_up(x, m):
    return ((x + m - 1) // m) * m


def _make_fused_kernel(num_blocks):
    """Kernel fusing `num_blocks` (conv1x1 + folded-DSBN + ReLU) stages."""

    def kernel(dom_ref, x_ref, *rest):
        # dom_ref : SMEM (1,) int32   -- domain index (only used by index_maps)
        # x_ref   : VMEM (TM, C0p)    -- channels-last activation tile
        # rest    : w1, b1, w2, b2, ..., o_ref
        #   wk : VMEM (1, Ck-1p, Ckp)  folded per-domain weight (compute dtype)
        #   bk : VMEM (1, 1, Ckp)      folded per-domain bias   (f32)
        # o_ref  : VMEM (TM, CLp)
        del dom_ref
        o_ref = rest[-1]
        wb = rest[:-1]
        y = x_ref[...]
        for k in range(num_blocks):
            w = wb[2 * k][0]          # (Cprev_p, Cnext_p)
            b = wb[2 * k + 1][0]      # (1, Cnext_p), f32
            y = jnp.dot(y.astype(w.dtype), w,
                        preferred_element_type=jnp.float32)
            y = jnp.maximum(y + b, 0.0)          # bias + ReLU in f32
        o_ref[...] = y.astype(o_ref.dtype)

    return kernel


def two_input_sequential(x_nchw, domain, blocks, *,
                         compute_dtype=jnp.bfloat16, tm=512):
    """TwoInputSequential.forward: (x, domain) -> (chained blocks(x), domain).

    blocks: list of (w, bn) with w: (Cin, Cout) 1x1-conv weight and
            bn: (num_domains, 4, Cout) = [gamma, beta, running_mean, running_var].
    """
    N, C0, H, W = x_nchw.shape
    M = N * H * W
    num_blocks = len(blocks)

    chans = [C0] + [w.shape[1] for (w, _) in blocks]
    cpad = [_round_up(c, LANE) for c in chans]

    # --- fold BN into per-domain weight/bias, pad channels to lane width -----
    folded = []
    for k, (w, bn) in enumerate(blocks):
        cin, cout = w.shape
        num_domains = bn.shape[0]
        gamma, beta, mean, var = bn[:, 0], bn[:, 1], bn[:, 2], bn[:, 3]
        scale = gamma * jax.lax.rsqrt(var + EPS)            # (D, cout)
        wf = w[None, :, :] * scale[:, None, :]              # (D, cin, cout)
        bf = beta - mean * scale                            # (D, cout)
        wp = jnp.zeros((num_domains, cpad[k], cpad[k + 1]), jnp.float32)
        wp = wp.at[:, :cin, :cout].set(wf).astype(compute_dtype)
        bp = jnp.zeros((num_domains, 1, cpad[k + 1]), jnp.float32)
        bp = bp.at[:, 0, :cout].set(bf)
        folded.append((wp, bp))

    # --- pick a row tile that fits a conservative VMEM budget ----------------
    act_itemsize = jnp.dtype(compute_dtype).itemsize
    wslice_bytes = sum(cpad[k] * cpad[k + 1] * act_itemsize + cpad[k + 1] * 4
                       for k in range(num_blocks))
    budget = 40 * 1024 * 1024                      # headroom under 48 MiB limit
    tm = max(16, (tm // 16) * 16)
    while tm > 16 and (2 * tm * cpad[0] * act_itemsize +
                       2 * tm * cpad[-1] * 4 +
                       2 * wslice_bytes) > budget:
        tm //= 2
    m_pad = _round_up(M, tm)

    # --- single NCHW -> channels-last (M, C) conversion, padded --------------
    x2d = jnp.transpose(x_nchw, (0, 2, 3, 1)).reshape(M, C0).astype(compute_dtype)
    xp = jnp.zeros((m_pad, cpad[0]), compute_dtype).at[:M, :C0].set(x2d)

    # --- one fused pallas_call over the whole chain ---------------------------
    in_specs = [pl.BlockSpec((tm, cpad[0]), lambda i, dom: (i, 0))]
    operands = [xp]
    for k, (wp, bp) in enumerate(folded):
        in_specs.append(pl.BlockSpec((1, cpad[k], cpad[k + 1]),
                                     lambda i, dom: (dom[0], 0, 0)))
        in_specs.append(pl.BlockSpec((1, 1, cpad[k + 1]),
                                     lambda i, dom: (dom[0], 0, 0)))
        operands += [wp, bp]

    out2d = pl.pallas_call(
        _make_fused_kernel(num_blocks),
        out_shape=jax.ShapeDtypeStruct((m_pad, cpad[-1]), jnp.float32),
        grid_spec=pltpu.PrefetchScalarGridSpec(
            num_scalar_prefetch=1,
            grid=(m_pad // tm,),
            in_specs=in_specs,
            out_specs=pl.BlockSpec((tm, cpad[-1]), lambda i, dom: (i, 0)),
        ),
        compiler_params=pltpu.CompilerParams(
            dimension_semantics=("parallel",),      # no carried state over rows
            vmem_limit_bytes=48 * 1024 * 1024,      # headroom under v7x 64 MiB
        ),
    )(domain, *operands)

    out = out2d[:M, :chans[-1]].reshape(N, H, W, chans[-1]).transpose(0, 3, 1, 2)
    return out, domain


def _reference(x, domain, blocks):
    # Pure-JAX f32 reference of the same forward (unfolded BN).
    d = int(domain[0])
    for (w, bn) in blocks:
        y = jnp.einsum('nchw,co->nohw', x, w)
        gamma, beta, mean, var = bn[d, 0], bn[d, 1], bn[d, 2], bn[d, 3]
        scale = gamma * jax.lax.rsqrt(var + EPS)
        y = (y - mean[None, :, None, None]) * scale[None, :, None, None] \
            + beta[None, :, None, None]
        x = jnp.maximum(y, 0.0)
    return x


if __name__ == "__main__":
    key = jax.random.PRNGKey(0)
    N, C, H, W = 2, 4, 16, 16
    NUM_DOMAINS = 2
    NUM_BLOCKS = 2

    k_x, *k_blocks = jax.random.split(key, 1 + 2 * NUM_BLOCKS)
    x = jax.random.normal(k_x, (N, C, H, W), dtype=jnp.float32)
    domain = jnp.array([1], dtype=jnp.int32)       # input2: domain index

    blocks = []
    for b in range(NUM_BLOCKS):
        kw, kb = k_blocks[2 * b], k_blocks[2 * b + 1]
        w = jax.random.normal(kw, (C, C), dtype=jnp.float32) * 0.2   # (Cin, Cout)
        raw = jax.random.normal(kb, (NUM_DOMAINS, 4, C), dtype=jnp.float32)
        gamma = 1.0 + 0.1 * raw[:, 0]
        beta = 0.1 * raw[:, 1]
        mean = 0.1 * raw[:, 2]
        var = jnp.abs(raw[:, 3]) + 0.5
        bn = jnp.stack([gamma, beta, mean, var], axis=1)             # (D, 4, C)
        blocks.append((w, bn))

    ref = _reference(x, domain, blocks)

    # f32 compute path: strict check of the fused kernel math.
    out_f32, dom_out = two_input_sequential(x, domain, blocks,
                                            compute_dtype=jnp.float32)
    out_f32 = jax.block_until_ready(out_f32)
    assert out_f32.shape == (N, C, H, W)
    assert jnp.allclose(out_f32, ref, atol=1e-4, rtol=1e-4)
    assert jnp.array_equal(dom_out, domain)        # input2 passes through

    # Default bf16 MXU path: loose statistical check (bf16 operand precision).
    out_bf16, dom_out2 = two_input_sequential(x, domain, blocks)
    out_bf16 = jax.block_until_ready(out_bf16)
    assert out_bf16.shape == (N, C, H, W)
    rel_err = jnp.linalg.norm(out_bf16 - ref) / (jnp.linalg.norm(ref) + 1e-12)
    assert rel_err < 3e-2
    assert jnp.array_equal(dom_out2, domain)

    print("KERNEL_OK")
</pallas_src>

<mosaic_0001>
module attributes {stable_mosaic.version = 11 : i64} {
  func.func @kernel(%arg0: i32, %arg1: memref<1xi32, #tpu.memory_space<smem>>, %arg2: memref<512x128xf32, #tpu.memory_space<vmem>>, %arg3: memref<1x128x128xf32, #tpu.memory_space<vmem>>, %arg4: memref<1x1x128xf32, #tpu.memory_space<vmem>>, %arg5: memref<1x128x128xf32, #tpu.memory_space<vmem>>, %arg6: memref<1x1x128xf32, #tpu.memory_space<vmem>>, %arg7: memref<512x128xf32, #tpu.memory_space<vmem>>) attributes {dimension_semantics = [#tpu.dimension_semantics<parallel>], iteration_bounds = array<i64: 1>, scalar_prefetch = 1 : i64, scratch_operands = 0 : i64, tpu.core_type = #tpu.core_type<tc>, window_params = [{transform_indices = @transform_0, window_bounds = array<i64: 512, 128>}, {transform_indices = @transform_1, window_bounds = array<i64: 1, 128, 128>}, {transform_indices = @transform_2, window_bounds = array<i64: 1, 1, 128>}, {transform_indices = @transform_3, window_bounds = array<i64: 1, 128, 128>}, {transform_indices = @transform_4, window_bounds = array<i64: 1, 1, 128>}, {transform_indices = @transform_5, window_bounds = array<i64: 512, 128>}]} {
    %c0 = arith.constant 0 : index
    %c0_0 = arith.constant 0 : index
    %0 = vector.load %arg2[%c0, %c0_0] : memref<512x128xf32, #tpu.memory_space<vmem>>, vector<512x128xf32>
    %c0_1 = arith.constant 0 : index
    %c0_2 = arith.constant 0 : index
    %c0_3 = arith.constant 0 : index
    %1 = vector.load %arg3[%c0_1, %c0_2, %c0_3] : memref<1x128x128xf32, #tpu.memory_space<vmem>>, vector<1x128x128xf32>
    %2 = vector.shape_cast %1 : vector<1x128x128xf32> to vector<128x128xf32>
    %c0_4 = arith.constant 0 : index
    %c0_5 = arith.constant 0 : index
    %c0_6 = arith.constant 0 : index
    %3 = vector.load %arg4[%c0_4, %c0_5, %c0_6] : memref<1x1x128xf32, #tpu.memory_space<vmem>>, vector<1x1x128xf32>
    %4 = vector.shape_cast %3 : vector<1x1x128xf32> to vector<1x128xf32>
    %cst = arith.constant dense<0.000000e+00> : vector<512x128xf32>
    %5 = tpu.matmul %0, %2, %cst {dimension_numbers = #tpu.dot_dimension_numbers<[1], [0], [0], [1], [0, 0, 1, 1], [], []>} : vector<512x128xf32>, vector<128x128xf32>, vector<512x128xf32> -> vector<512x128xf32>
    %6 = vector.broadcast %4 : vector<1x128xf32> to vector<512x128xf32>
    %7 = arith.addf %5, %6 : vector<512x128xf32>
    %cst_7 = arith.constant 0.000000e+00 : f32
    %8 = vector.broadcast %cst_7 : f32 to vector<512x128xf32>
    %9 = arith.maximumf %7, %8 : vector<512x128xf32>
    %c0_8 = arith.constant 0 : index
    %c0_9 = arith.constant 0 : index
    %c0_10 = arith.constant 0 : index
    %10 = vector.load %arg5[%c0_8, %c0_9, %c0_10] : memref<1x128x128xf32, #tpu.memory_space<vmem>>, vector<1x128x128xf32>
    %11 = vector.shape_cast %10 : vector<1x128x128xf32> to vector<128x128xf32>
    %c0_11 = arith.constant 0 : index
    %c0_12 = arith.constant 0 : index
    %c0_13 = arith.constant 0 : index
    %12 = vector.load %arg6[%c0_11, %c0_12, %c0_13] : memref<1x1x128xf32, #tpu.memory_space<vmem>>, vector<1x1x128xf32>
    %13 = vector.shape_cast %12 : vector<1x1x128xf32> to vector<1x128xf32>
    %cst_14 = arith.constant dense<0.000000e+00> : vector<512x128xf32>
    %14 = tpu.matmul %9, %11, %cst_14 {dimension_numbers = #tpu.dot_dimension_numbers<[1], [0], [0], [1], [0, 0, 1, 1], [], []>} : vector<512x128xf32>, vector<128x128xf32>, vector<512x128xf32> -> vector<512x128xf32>
    %15 = vector.broadcast %13 : vector<1x128xf32> to vector<512x128xf32>
    %16 = arith.addf %14, %15 : vector<512x128xf32>
    %cst_15 = arith.constant 0.000000e+00 : f32
    %17 = vector.broadcast %cst_15 : f32 to vector<512x128xf32>
    %18 = arith.maximumf %16, %17 : vector<512x128xf32>
    %c0_16 = arith.constant 0 : index
    %c0_17 = arith.constant 0 : index
    %19 = vector.load %arg7[%c0_16, %c0_17] : memref<512x128xf32, #tpu.memory_space<vmem>>, vector<512x128xf32>
    tpu.vector_store %arg7[%c0_16, %c0_17], %18 {strides = array<i32>} : memref<512x128xf32, #tpu.memory_space<vmem>>, vector<512x128xf32>,
    return
  }
  func.func @transform_0(%arg0: i32, %arg1: memref<1xi32, #tpu.memory_space<smem>>) -> (i32, i32) {
    %c0_i32 = arith.constant 0 : i32
    %c0_i32_0 = arith.constant 0 : i32
    return %arg0, %c0_i32 : i32, i32
  }
  func.func @transform_1(%arg0: i32, %arg1: memref<1xi32, #tpu.memory_space<smem>>) -> (i32, i32, i32) {
    %c0 = arith.constant 0 : index
    %0 = memref.load %arg1[%c0] : memref<1xi32, #tpu.memory_space<smem>>
    %c0_i32 = arith.constant 0 : i32
    %c0_i32_0 = arith.constant 0 : i32
    %c0_i32_1 = arith.constant 0 : i32
    return %0, %c0_i32, %c0_i32_0 : i32, i32, i32
  }
  func.func @transform_2(%arg0: i32, %arg1: memref<1xi32, #tpu.memory_space<smem>>) -> (i32, i32, i32) {
    %c0 = arith.constant 0 : index
    %0 = memref.load %arg1[%c0] : memref<1xi32, #tpu.memory_space<smem>>
    %c0_i32 = arith.constant 0 : i32
    %c0_i32_0 = arith.constant 0 : i32
    %c0_i32_1 = arith.constant 0 : i32
    return %0, %c0_i32, %c0_i32_0 : i32, i32, i32
  }
  func.func @transform_3(%arg0: i32, %arg1: memref<1xi32, #tpu.memory_space<smem>>) -> (i32, i32, i32) {
    %c0 = arith.constant 0 : index
    %0 = memref.load %arg1[%c0] : memref<1xi32, #tpu.memory_space<smem>>
    %c0_i32 = arith.constant 0 : i32
    %c0_i32_0 = arith.constant 0 : i32
    %c0_i32_1 = arith.constant 0 : i32
    return %0, %c0_i32, %c0_i32_0 : i32, i32, i32
  }
  func.func @transform_4(%arg0: i32, %arg1: memref<1xi32, #tpu.memory_space<smem>>) -> (i32, i32, i32) {
    %c0 = arith.constant 0 : index
    %0 = memref.load %arg1[%c0] : memref<1xi32, #tpu.memory_space<smem>>
    %c0_i32 = arith.constant 0 : i32
    %c0_i32_0 = arith.constant 0 : i32
    %c0_i32_1 = arith.constant 0 : i32
    return %0, %c0_i32, %c0_i32_0 : i32, i32, i32
  }
  func.func @transform_5(%arg0: i32, %arg1: memref<1xi32, #tpu.memory_space<smem>>) -> (i32, i32) {
    %c0_i32 = arith.constant 0 : i32
    %c0_i32_0 = arith.constant 0 : i32
    return %arg0, %c0_i32 : i32, i32
  }
}

</mosaic_0001>

<llo_original>
// kernel: tpu_custom_call.1
$region0: #{tpu_custom_call.1}
  #allocation0 [shape = 'u32[]', space=smem, size = 0x4, offset = 0x4, fixed_abs, tag = 'smem constant byte address 0x4 - core index']
  #allocation1 [shape = 'u32[144,128]{1,0:T(1,128)}', space=vmem, size = 0x12000, scoped, tag = 'internal scratch']
  #allocation2 [shape = 's32[1]{0}', space=sflag, size = 0x4, scoped, tag = 'scoped memory for tpu_custom_call.1']
  #allocation3 [shape = 's32[1]{0:T(128)S(6)}', space=smem, size = 0x200, scoped, tag = 'prefetched SMEM operand 0']
  %s0 = inlined_call_operand.<no memory space> [shape: s32[1], index: 0, kind: input, shape index: {}]
  %s1 = inlined_call_operand.hbm [shape: f32[512,128], index: 1, kind: input, shape index: {}]
  %s2 = inlined_call_operand.hbm [shape: f32[2,128,128], index: 2, kind: input, shape index: {}]
  %s3 = inlined_call_operand.vmem [shape: f32[2,1,128], index: 3, kind: input, shape index: {}]
  %s4 = inlined_call_operand.hbm [shape: f32[2,128,128], index: 4, kind: input, shape index: {}]
  %s5 = inlined_call_operand.vmem [shape: f32[2,1,128], index: 5, kind: input, shape index: {}]
  %s6 = inlined_call_operand.hbm [shape: f32[512,128], index: 6, kind: output, shape index: {}]
  %s7 = sld [smem:[#allocation0]]
  $region42: #{tpu_custom_call.1} parent=0
    _
  %s9 = ssub.s32 1, %s7
  %s10 = scalar_select 0, %s9, %s7
  %11 = sst [smem:[#allocation3]] %s0
  $region1: #{tpu_custom_call.1} parent=0
    #allocation4 [shape = 'u8[262144]{0}', space=vmem, size = 0x40000, scoped, tag = 'input window, operand 1, single buffered']
    #allocation5 [shape = 's32[1]{0}', space=sflag, size = 0x4, scoped, tag = 'scoped memory for tpu_custom_call.1']
    #allocation6 [shape = 's32[1]{0}', space=sflag, size = 0x4, scoped, tag = 'scoped memory for tpu_custom_call.1']
    #allocation7 [shape = 'u8[65536]{0}', space=vmem, size = 0x10000, scoped, tag = 'input window, operand 2, single buffered']
    #allocation8 [shape = 's32[1]{0}', space=sflag, size = 0x4, scoped, tag = 'scoped memory for tpu_custom_call.1']
    #allocation9 [shape = 'u8[65536]{0}', space=vmem, size = 0x10000, scoped, tag = 'input window, operand 4, single buffered']
    #allocation10 [shape = 'u8[262144]{0}', space=vmem, size = 0x40000, scoped, tag = 'output window, operand 0, single buffered']
    %12 = vsyncpa [#allocation5], 0
    %13 = vsyncpa [#allocation8], 0
    %14 = vsyncpa [#allocation6], 0
    // Predicated region
    $region2: #{tpu_custom_call.1} parent=1 // pred_check
      _
    $region3: #{tpu_custom_call.1} parent=1 // pred_check_branch
      %16 = sbr.rel (0) target = $region5
    $region4: #{tpu_custom_call.1} parent=1 // pred_region
      %s18 = ssub.s32 8192, 8192
      %19 = vsyncadd [#allocation5], %s18
      %s20 = sshll.u32 [#allocation4], 4
      %s21 = int_to_ptr.vmem [resolvable:$true] %s20
      %26 = dma.hbm_to_vmem [thread:$0]  %s1, 8192, %s21, [#allocation5], 128, 128, 8
    $region5: #{tpu_custom_call.1} parent=1 // pred_fallthru
      _
    // Predicated region
    $region6: #{tpu_custom_call.1} parent=1 // pred_check
      _
    $region7: #{tpu_custom_call.1} parent=1 // pred_check_branch
      %28 = sbr.rel (0) target = $region9
    $region8: #{tpu_custom_call.1} parent=1 // pred_region
      %s29 = sld [smem:[#allocation3]]
      %s31 = ssub.s32 2048, 2048
      %32 = vsyncadd [#allocation8], %s31
      %s33 = smul.addr %s29, 16
      %s34 = smul.addr %s33, 128
      %s35 = scalar_lea.hbm %s2, %s34
      %s36 = sshll.u32 [#allocation7], 4
      %s37 = int_to_ptr.vmem [resolvable:$true] %s36
      %42 = dma.hbm_to_vmem [thread:$0]  %s35, 2048, %s37, [#allocation8], 128, 128, 8
    $region9: #{tpu_custom_call.1} parent=1 // pred_fallthru
      _
    // Predicated region
    $region10: #{tpu_custom_call.1} parent=1 // pred_check
      _
    $region11: #{tpu_custom_call.1} parent=1 // pred_check_branch
      %44 = sbr.rel (0) target = $region13
    $region12: #{tpu_custom_call.1} parent=1 // pred_region
      %s45 = sld [smem:[#allocation3]]
      %p46 = scmp.lt.s32.totalorder %s45, 1
      %s47 = scalar_select %p46, %s45, 1
      %s48 = scalar_lea.vmem %s3, %s47
      %s49 = sld [smem:[#allocation3]]
    $region13: #{tpu_custom_call.1} parent=1 // pred_fallthru
      _
    // Predicated region
    $region14: #{tpu_custom_call.1} parent=1 // pred_check
      _
    $region15: #{tpu_custom_call.1} parent=1 // pred_check_branch
      %51 = sbr.rel (0) target = $region17
    $region16: #{tpu_custom_call.1} parent=1 // pred_region
      %s52 = sld [smem:[#allocation3]]
      %s54 = ssub.s32 2048, 2048
      %55 = vsyncadd [#allocation8], %s54
      %s56 = smul.addr %s52, 16
      %s57 = smul.addr %s56, 128
      %s58 = scalar_lea.hbm %s4, %s57
      %s59 = sshll.u32 [#allocation9], 4
      %s60 = int_to_ptr.vmem [resolvable:$true] %s59
      %65 = dma.hbm_to_vmem [thread:$0]  %s58, 2048, %s60, [#allocation8], 128, 128, 8
    $region17: #{tpu_custom_call.1} parent=1 // pred_fallthru
      _
    // Predicated region
    $region18: #{tpu_custom_call.1} parent=1 // pred_check
      _
    $region19: #{tpu_custom_call.1} parent=1 // pred_check_branch
      %67 = sbr.rel (0) target = $region21
    $region20: #{tpu_custom_call.1} parent=1 // pred_region
      %s68 = sld [smem:[#allocation3]]
      %p69 = scmp.lt.s32.totalorder %s68, 1
      %s70 = scalar_select %p69, %s68, 1
      %s71 = scalar_lea.vmem %s5, %s70
      %s72 = sld [smem:[#allocation3]]
    $region21: #{tpu_custom_call.1} parent=1 // pred_fallthru
      _
    // Predicated region
    $region22: #{tpu_custom_call.1} parent=1 // pred_check
      _
    $region23: #{tpu_custom_call.1} parent=1 // pred_check_branch
      %74 = sbr.rel (0) target = $region25
    $region24: #{tpu_custom_call.1} parent=1 // pred_region
      %75 = dma.done [#allocation5], 8192
    $region25: #{tpu_custom_call.1} parent=1 // pred_fallthru
      _
    // Predicated region
    $region26: #{tpu_custom_call.1} parent=1 // pred_check
      _
    $region27: #{tpu_custom_call.1} parent=1 // pred_check_branch
      %77 = sbr.rel (0) target = $region29
    $region28: #{tpu_custom_call.1} parent=1 // pred_region
      %78 = dma.done [#allocation8], 2048
    $region29: #{tpu_custom_call.1} parent=1 // pred_fallthru
      _
    // Predicated region
    $region30: #{tpu_custom_call.1} parent=1 // pred_check
      _
    $region31: #{tpu_custom_call.1} parent=1 // pred_check_branch
      %80 = sbr.rel (0) target = $region33
    $region32: #{tpu_custom_call.1} parent=1 // pred_region
      %81 = dma.done [#allocation8], 2048
    $region33: #{tpu_custom_call.1} parent=1 // pred_fallthru
      _
    %s82 = sld [smem:[#allocation3]]
    %p83 = scmp.lt.s32.totalorder %s82, 1
    %s84 = scalar_select %p83, %s82, 1
    %s85 = scalar_lea.vmem %s3, %s84
    %s86 = sld [smem:[#allocation3]]
    %p87 = scmp.lt.s32.totalorder %s86, 1
    %s88 = scalar_select %p87, %s86, 1
    %s89 = scalar_lea.vmem %s5, %s88
    %s90 = sld [smem:[#allocation3]]
    %s91 = sld [smem:[#allocation3]]
    %p92 = scmp.lt.s32.totalorder %s91, 1
    %s93 = scalar_select %p92, %s91, 1
    %s94 = scalar_lea.vmem %s3, %s93
    %s95 = sld [smem:[#allocation3]]
    %s96 = sld [smem:[#allocation3]]
    %s97 = sld [smem:[#allocation3]]
    %p98 = scmp.lt.s32.totalorder %s97, 1
    %s99 = scalar_select %p98, %s97, 1
    %s100 = scalar_lea.vmem %s5, %s99
    %s101 = sld [smem:[#allocation3]]
    %v102 = vld [vmem:[#allocation4] sm:$0xff]
    %v103 = vld [vmem:[#allocation4 + $0x8] sm:$0xff]
    %v104 = vld [vmem:[#allocation4 + $0x10] sm:$0xff]
    %v105 = vld [vmem:[#allocation4 + $0x18] sm:$0xff]
    %v106 = vld [vmem:[#allocation4 + $0x20] sm:$0xff]
    %v107 = vld [vmem:[#allocation4 + $0x28] sm:$0xff]
    %v108 = vld [vmem:[#allocation4 + $0x30] sm:$0xff]
    %v109 = vld [vmem:[#allocation4 + $0x38] sm:$0xff]
    %v110 = vld [vmem:[#allocation4 + $0x40] sm:$0xff]
    %v111 = vld [vmem:[#allocation4 + $0x48] sm:$0xff]
    %v112 = vld [vmem:[#allocation4 + $0x50] sm:$0xff]
    %v113 = vld [vmem:[#allocation4 + $0x58] sm:$0xff]
    %v114 = vld [vmem:[#allocation4 + $0x60] sm:$0xff]
    %v115 = vld [vmem:[#allocation4 + $0x68] sm:$0xff]
    %v116 = vld [vmem:[#allocation4 + $0x70] sm:$0xff]
    %v117 = vld [vmem:[#allocation4 + $0x78] sm:$0xff]
    %v118 = vld [vmem:[#allocation4 + $0x80] sm:$0xff]
    %v119 = vld [vmem:[#allocation4 + $0x88] sm:$0xff]
    %v120 = vld [vmem:[#allocation4 + $0x90] sm:$0xff]
    %v121 = vld [vmem:[#allocation4 + $0x98] sm:$0xff]
    %v122 = vld [vmem:[#allocation4 + $0xa0] sm:$0xff]
    %v123 = vld [vmem:[#allocation4 + $0xa8] sm:$0xff]
    %v124 = vld [vmem:[#allocation4 + $0xb0] sm:$0xff]
    %v125 = vld [vmem:[#allocation4 + $0xb8] sm:$0xff]
    %v126 = vld [vmem:[#allocation4 + $0xc0] sm:$0xff]
    %v127 = vld [vmem:[#allocation4 + $0xc8] sm:$0xff]
    %v128 = vld [vmem:[#allocation4 + $0xd0] sm:$0xff]
    %v129 = vld [vmem:[#allocation4 + $0xd8] sm:$0xff]
    %v130 = vld [vmem:[#allocation4 + $0xe0] sm:$0xff]
    %v131 = vld [vmem:[#allocation4 + $0xe8] sm:$0xff]
    %v132 = vld [vmem:[#allocation4 + $0xf0] sm:$0xff]
    %v133 = vld [vmem:[#allocation4 + $0xf8] sm:$0xff]
    %v134 = vld [vmem:[#allocation4 + $0x100] sm:$0xff]
    %v135 = vld [vmem:[#allocation4 + $0x108] sm:$0xff]
    %v136 = vld [vmem:[#allocation4 + $0x110] sm:$0xff]
    %v137 = vld [vmem:[#allocation4 + $0x118] sm:$0xff]
    %v138 = vld [vmem:[#allocation4 + $0x120] sm:$0xff]
    %v139 = vld [vmem:[#allocation4 + $0x128] sm:$0xff]
    %v140 = vld [vmem:[#allocation4 + $0x130] sm:$0xff]
    %v141 = vld [vmem:[#allocation4 + $0x138] sm:$0xff]
    %v142 = vld [vmem:[#allocation4 + $0x140] sm:$0xff]
    %v143 = vld [vmem:[#allocation4 + $0x148] sm:$0xff]
    %v144 = vld [vmem:[#allocation4 + $0x150] sm:$0xff]
    %v145 = vld [vmem:[#allocation4 + $0x158] sm:$0xff]
    %v146 = vld [vmem:[#allocation4 + $0x160] sm:$0xff]
    %v147 = vld [vmem:[#allocation4 + $0x168] sm:$0xff]
    %v148 = vld [vmem:[#allocation4 + $0x170] sm:$0xff]
    %v149 = vld [vmem:[#allocation4 + $0x178] sm:$0xff]
    %v150 = vld [vmem:[#allocation4 + $0x180] sm:$0xff]
    %v151 = vld [vmem:[#allocation4 + $0x188] sm:$0xff]
    %v152 = vld [vmem:[#allocation4 + $0x190] sm:$0xff]
    %v153 = vld [vmem:[#allocation4 + $0x198] sm:$0xff]
    %v154 = vld [vmem:[#allocation4 + $0x1a0] sm:$0xff]
    %v155 = vld [vmem:[#allocation4 + $0x1a8] sm:$0xff]
    %v156 = vld [vmem:[#allocation4 + $0x1b0] sm:$0xff]
    %v157 = vld [vmem:[#allocation4 + $0x1b8] sm:$0xff]
    %v158 = vld [vmem:[#allocation4 + $0x1c0] sm:$0xff]
    %v159 = vld [vmem:[#allocation4 + $0x1c8] sm:$0xff]
    %v160 = vld [vmem:[#allocation4 + $0x1d0] sm:$0xff]
    %v161 = vld [vmem:[#allocation4 + $0x1d8] sm:$0xff]
    %v162 = vld [vmem:[#allocation4 + $0x1e0] sm:$0xff]
    %v163 = vld [vmem:[#allocation4 + $0x1e8] sm:$0xff]
    %v164 = vld [vmem:[#allocation4 + $0x1f0] sm:$0xff]
    %v165 = vld [vmem:[#allocation4 + $0x1f8] sm:$0xff]
    %v166 = vld [vmem:[#allocation7] sm:$0xff]
    %v167 = vld [vmem:[#allocation7 + $0x8] sm:$0xff]
    %v168 = vld [vmem:[#allocation7 + $0x10] sm:$0xff]
    %v169 = vld [vmem:[#allocation7 + $0x18] sm:$0xff]
    %v170 = vld [vmem:[#allocation7 + $0x20] sm:$0xff]
    %v171 = vld [vmem:[#allocation7 + $0x28] sm:$0xff]
    %v172 = vld [vmem:[#allocation7 + $0x30] sm:$0xff]
    %v173 = vld [vmem:[#allocation7 + $0x38] sm:$0xff]
    %v174 = vld [vmem:[#allocation7 + $0x40] sm:$0xff]
    %v175 = vld [vmem:[#allocation7 + $0x48] sm:$0xff]
    %v176 = vld [vmem:[#allocation7 + $0x50] sm:$0xff]
    %v177 = vld [vmem:[#allocation7 + $0x58] sm:$0xff]
    %v178 = vld [vmem:[#allocation7 + $0x60] sm:$0xff]
    %v179 = vld [vmem:[#allocation7 + $0x68] sm:$0xff]
    %v180 = vld [vmem:[#allocation7 + $0x70] sm:$0xff]
    %v181 = vld [vmem:[#allocation7 + $0x78] sm:$0xff]
    %v182 = vld [vmem:[%s94] sm:$0x1]
    %v184 = vlaneseq
    %v185 = vshrl.u32 %v184, 7
    %v186 = vsub.s32 0, %v185
    %v187 = vrot.slane %v182, %v186
    %189 = vmatprep.subr.mxu0 0.0
    %190 = vmatpush1.msra.mxu0 %v166
    %191 = vmatprep.subr.mxu0 0.0
    %192 = vmatpush1.msra.mxu0 %v167
    %193 = vmatprep.subr.mxu0 0.0
    %194 = vmatpush1.msra.mxu0 %v168
    %195 = vmatprep.subr.mxu0 0.0
    %196 = vmatpush1.msra.mxu0 %v169
    %197 = vmatprep.subr.mxu0 0.0
    %198 = vmatpush1.msra.mxu0 %v170
    %199 = vmatprep.subr.mxu0 0.0
    %200 = vmatpush1.msra.mxu0 %v171
    %201 = vmatprep.subr.mxu0 0.0
    %202 = vmatpush1.msra.mxu0 %v172
    %203 = vmatprep.subr.mxu0 0.0
    %204 = vmatpush1.msra.mxu0 %v173
    %205 = vmatprep.subr.mxu0 0.0
    %206 = vmatpush1.msra.mxu0 %v174
    %207 = vmatprep.subr.mxu0 0.0
    %208 = vmatpush1.msra.mxu0 %v175
    %209 = vmatprep.subr.mxu0 0.0
    %210 = vmatpush1.msra.mxu0 %v176
    %211 = vmatprep.subr.mxu0 0.0
    %212 = vmatpush1.msra.mxu0 %v177
    %213 = vmatprep.subr.mxu0 0.0
    %214 = vmatpush1.msra.mxu0 %v178
    %215 = vmatprep.subr.mxu0 0.0
    %216 = vmatpush1.msra.mxu0 %v179
    %217 = vmatprep.subr.mxu0 0.0
    %218 = vmatpush1.msra.mxu0 %v180
    %219 = vmatprep.subr.mxu0 0.0
    %220 = vmatpush1.msra.mxu0 %v181
    %221 = vmatprep.subr.mxu0 0.0
    %222 = vmatpush1.msra.mxu0 0.0
    %223 = vmatprep.subr.mxu0 0.0
    %224 = vmatpush1.msra.mxu0 0.0
    %225 = vmatprep.subr.mxu0 0.0
    %226 = vmatpush1.msra.mxu0 0.0
    %227 = vmatprep.subr.mxu0 0.0
    %228 = vmatpush1.msra.mxu0 0.0
    %229 = vmatprep.subr.mxu0 0.0
    %230 = vmatpush1.msra.mxu0 0.0
    %231 = vmatprep.subr.mxu0 0.0
    %232 = vmatpush1.msra.mxu0 0.0
    %233 = vmatprep.subr.mxu0 0.0
    %234 = vmatpush1.msra.mxu0 0.0
    %235 = vmatprep.subr.mxu0 0.0
    %236 = vmatpush1.msra.mxu0 0.0
    %237 = vmatprep.subr.mxu0 0.0
    %238 = vmatpush1.msra.mxu0 0.0
    %239 = vmatprep.subr.mxu0 0.0
    %240 = vmatpush1.msra.mxu0 0.0
    %241 = vmatprep.subr.mxu0 0.0
    %242 = vmatpush1.msra.mxu0 0.0
    %243 = vmatprep.subr.mxu0 0.0
    %244 = vmatpush1.msra.mxu0 0.0
    %245 = vmatprep.subr.mxu0 0.0
    %246 = vmatpush1.msra.mxu0 0.0
    %247 = vmatprep.subr.mxu0 0.0
    %248 = vmatpush1.msra.mxu0 0.0
    %249 = vmatprep.subr.mxu0 0.0
    %250 = vmatpush1.msra.mxu0 0.0
    %251 = vmatprep.subr.mxu0 0.0
    %252 = vmatpush1.msra.mxu0 0.0
    %253 = vmatprep.mubr.f32.mxu0 0.0
    %254 = vmatmul.mubr.f32.gmra.mrb[0].mxu0 %v102
    %v255 = vpop.f32.mrb[0].mxu0
    %v256 = vadd.f32 %v187, %v255
    %v257 = vpop.f32.mrb[0].mxu0
    %258 = vmatprep.mubr.f32.mxu0 0.0
    %259 = vmatmul.mubr.f32.gmra.mrb[0].mxu0 %v103
    %v260 = vpop.f32.mrb[0].mxu0
    %v261 = vadd.f32 %v187, %v260
    %v262 = vpop.f32.mrb[0].mxu0
    %263 = vmatprep.mubr.f32.mxu0 0.0
    %264 = vmatmul.mubr.f32.gmra.mrb[0].mxu0 %v104
    %v265 = vpop.f32.mrb[0].mxu0
    %v266 = vadd.f32 %v187, %v265
    %v267 = vpop.f32.mrb[0].mxu0
    %268 = vmatprep.mubr.f32.mxu0 0.0
    %269 = vmatmul.mubr.f32.gmra.mrb[0].mxu0 %v105
    %v270 = vpop.f32.mrb[0].mxu0
    %v271 = vadd.f32 %v187, %v270
    %v272 = vpop.f32.mrb[0].mxu0
    %273 = vmatprep.mubr.f32.mxu0 0.0
    %274 = vmatmul.mubr.f32.gmra.mrb[0].mxu0 %v106
    %v275 = vpop.f32.mrb[0].mxu0
    %v276 = vadd.f32 %v187, %v275
    %v277 = vpop.f32.mrb[0].mxu0
    %278 = vmatprep.mubr.f32.mxu0 0.0
    %279 = vmatmul.mubr.f32.gmra.mrb[0].mxu0 %v107
    %v280 = vpop.f32.mrb[0].mxu0
    %v281 = vadd.f32 %v187, %v280
    %v282 = vpop.f32.mrb[0].mxu0
    %283 = vmatprep.mubr.f32.mxu0 0.0
    %284 = vmatmul.mubr.f32.gmra.mrb[0].mxu0 %v108
    %v285 = vpop.f32.mrb[0].mxu0
    %v286 = vadd.f32 %v187, %v285
    %v287 = vpop.f32.mrb[0].mxu0
    %288 = vmatprep.mubr.f32.mxu0 0.0
    %289 = vmatmul.mubr.f32.gmra.mrb[0].mxu0 %v109
    %v290 = vpop.f32.mrb[0].mxu0
    %v291 = vadd.f32 %v187, %v290
    %v292 = vpop.f32.mrb[0].mxu0
    %293 = vmatprep.mubr.f32.mxu0 0.0
    %294 = vmatmul.mubr.f32.gmra.mrb[0].mxu0 %v110
    %v295 = vpop.f32.mrb[0].mxu0
    %v296 = vadd.f32 %v187, %v295
    %v297 = vpop.f32.mrb[0].mxu0
    %298 = vmatprep.mubr.f32.mxu0 0.0
    %299 = vmatmul.mubr.f32.gmra.mrb[0].mxu0 %v111
    %v300 = vpop.f32.mrb[0].mxu0
    %v301 = vadd.f32 %v187, %v300
    %v302 = vpop.f32.mrb[0].mxu0
    %303 = vmatprep.mubr.f32.mxu0 0.0
    %304 = vmatmul.mubr.f32.gmra.mrb[0].mxu0 %v112
    %v305 = vpop.f32.mrb[0].mxu0
    %v306 = vadd.f32 %v187, %v305
    %v307 = vpop.f32.mrb[0].mxu0
    %308 = vmatprep.mubr.f32.mxu0 0.0
    %309 = vmatmul.mubr.f32.gmra.mrb[0].mxu0 %v113
    %v310 = vpop.f32.mrb[0].mxu0
    %v311 = vadd.f32 %v187, %v310
    %v312 = vpop.f32.mrb[0].mxu0
    %313 = vmatprep.mubr.f32.mxu0 0.0
    %314 = vmatmul.mubr.f32.gmra.mrb[0].mxu0 %v114
    %v315 = vpop.f32.mrb[0].mxu0
    %v316 = vadd.f32 %v187, %v315
    %v317 = vpop.f32.mrb[0].mxu0
    %318 = vmatprep.mubr.f32.mxu0 0.0
    %319 = vmatmul.mubr.f32.gmra.mrb[0].mxu0 %v115
    %v320 = vpop.f32.mrb[0].mxu0
    %v321 = vadd.f32 %v187, %v320
    %v322 = vpop.f32.mrb[0].mxu0
    %323 = vmatprep.mubr.f32.mxu0 0.0
    %324 = vmatmul.mubr.f32.gmra.mrb[0].mxu0 %v116
    %v325 = vpop.f32.mrb[0].mxu0
    %v326 = vadd.f32 %v187, %v325
    %v327 = vpop.f32.mrb[0].mxu0
    %328 = vmatprep.mubr.f32.mxu0 0.0
    %329 = vmatmul.mubr.f32.gmra.mrb[0].mxu0 %v117
    %v330 = vpop.f32.mrb[0].mxu0
    %v331 = vadd.f32 %v187, %v330
    %v332 = vpop.f32.mrb[0].mxu0
    %333 = vmatprep.mubr.f32.mxu0 0.0
    %334 = vmatmul.mubr.f32.gmra.mrb[0].mxu0 %v118
    %v335 = vpop.f32.mrb[0].mxu0
    %v336 = vadd.f32 %v187, %v335
    %v337 = vpop.f32.mrb[0].mxu0
    %338 = vmatprep.mubr.f32.mxu0 0.0
    %339 = vmatmul.mubr.f32.gmra.mrb[0].mxu0 %v119
    %v340 = vpop.f32.mrb[0].mxu0
    %v341 = vadd.f32 %v187, %v340
    %v342 = vpop.f32.mrb[0].mxu0
    %343 = vmatprep.mubr.f32.mxu0 0.0
    %344 = vmatmul.mubr.f32.gmra.mrb[0].mxu0 %v120
    %v345 = vpop.f32.mrb[0].mxu0
    %v346 = vadd.f32 %v187, %v345
    %v347 = vpop.f32.mrb[0].mxu0
    %348 = vmatprep.mubr.f32.mxu0 0.0
    %349 = vmatmul.mubr.f32.gmra.mrb[0].mxu0 %v121
    %v350 = vpop.f32.mrb[0].mxu0
    %v351 = vadd.f32 %v187, %v350
    %v352 = vpop.f32.mrb[0].mxu0
    %353 = vmatprep.mubr.f32.mxu0 0.0
    %354 = vmatmul.mubr.f32.gmra.mrb[0].mxu0 %v122
    %v355 = vpop.f32.mrb[0].mxu0
    %v356 = vadd.f32 %v187, %v355
    %v357 = vpop.f32.mrb[0].mxu0
    %358 = vmatprep.mubr.f32.mxu0 0.0
    %359 = vmatmul.mubr.f32.gmra.mrb[0].mxu0 %v123
    %v360 = vpop.f32.mrb[0].mxu0
    %v361 = vadd.f32 %v187, %v360
    %v362 = vpop.f32.mrb[0].mxu0
    %363 = vmatprep.mubr.f32.mxu0 0.0
    %364 = vmatmul.mubr.f32.gmra.mrb[0].mxu0 %v124
    %v365 = vpop.f32.mrb[0].mxu0
    %v366 = vadd.f32 %v187, %v365
    %v367 = vpop.f32.mrb[0].mxu0
    %368 = vmatprep.mubr.f32.mxu0 0.0
    %369 = vmatmul.mubr.f32.gmra.mrb[0].mxu0 %v125
    %v370 = vpop.f32.mrb[0].mxu0
    %v371 = vadd.f32 %v187, %v370
    %v372 = vpop.f32.mrb[0].mxu0
    %373 = vmatprep.mubr.f32.mxu0 0.0
    %374 = vmatmul.mubr.f32.gmra.mrb[0].mxu0 %v126
    %v375 = vpop.f32.mrb[0].mxu0
    %v376 = vadd.f32 %v187, %v375
    %v377 = vpop.f32.mrb[0].mxu0
    %378 = vmatprep.mubr.f32.mxu0 0.0
    %379 = vmatmul.mubr.f32.gmra.mrb[0].mxu0 %v127
    %v380 = vpop.f32.mrb[0].mxu0
    %v381 = vadd.f32 %v187, %v380
    %v382 = vpop.f32.mrb[0].mxu0
    %383 = vmatprep.mubr.f32.mxu0 0.0
    %384 = vmatmul.mubr.f32.gmra.mrb[0].mxu0 %v128
    %v385 = vpop.f32.mrb[0].mxu0
    %v386 = vadd.f32 %v187, %v385
    %v387 = vpop.f32.mrb[0].mxu0
    %388 = vmatprep.mubr.f32.mxu0 0.0
    %389 = vmatmul.mubr.f32.gmra.mrb[0].mxu0 %v129
    %v390 = vpop.f32.mrb[0].mxu0
    %v391 = vadd.f32 %v187, %v390
    %v392 = vpop.f32.mrb[0].mxu0
    %393 = vmatprep.mubr.f32.mxu0 0.0
    %394 = vmatmul.mubr.f32.gmra.mrb[0].mxu0 %v130
    %v395 = vpop.f32.mrb[0].mxu0
    %v396 = vadd.f32 %v187, %v395
    %v397 = vpop.f32.mrb[0].mxu0
    %398 = vmatprep.mubr.f32.mxu0 0.0
    %399 = vmatmul.mubr.f32.gmra.mrb[0].mxu0 %v131
    %v400 = vpop.f32.mrb[0].mxu0
    %v401 = vadd.f32 %v187, %v400
    %v402 = vpop.f32.mrb[0].mxu0
    %403 = vmatprep.mubr.f32.mxu0 0.0
    %404 = vmatmul.mubr.f32.gmra.mrb[0].mxu0 %v132
    %v405 = vpop.f32.mrb[0].mxu0
    %v406 = vadd.f32 %v187, %v405
    %v407 = vpop.f32.mrb[0].mxu0
    %408 = vmatprep.mubr.f32.mxu0 0.0
    %409 = vmatmul.mubr.f32.gmra.mrb[0].mxu0 %v133
    %v410 = vpop.f32.mrb[0].mxu0
    %v411 = vadd.f32 %v187, %v410
    %v412 = vpop.f32.mrb[0].mxu0
    %413 = vmatprep.mubr.f32.mxu0 0.0
    %414 = vmatmul.mubr.f32.gmra.mrb[0].mxu0 %v134
    %v415 = vpop.f32.mrb[0].mxu0
    %v416 = vadd.f32 %v187, %v415
    %v417 = vpop.f32.mrb[0].mxu0
    %418 = vmatprep.mubr.f32.mxu0 0.0
    %419 = vmatmul.mubr.f32.gmra.mrb[0].mxu0 %v135
    %v420 = vpop.f32.mrb[0].mxu0
    %v421 = vadd.f32 %v187, %v420
    %v422 = vpop.f32.mrb[0].mxu0
    %423 = vmatprep.mubr.f32.mxu0 0.0
    %424 = vmatmul.mubr.f32.gmra.mrb[0].mxu0 %v136
    %v425 = vpop.f32.mrb[0].mxu0
    %v426 = vadd.f32 %v187, %v425
    %v427 = vpop.f32.mrb[0].mxu0
    %428 = vmatprep.mubr.f32.mxu0 0.0
    %429 = vmatmul.mubr.f32.gmra.mrb[0].mxu0 %v137
    %v430 = vpop.f32.mrb[0].mxu0
    %v431 = vadd.f32 %v187, %v430
    %v432 = vpop.f32.mrb[0].mxu0
    %433 = vmatprep.mubr.f32.mxu0 0.0
    %434 = vmatmul.mubr.f32.gmra.mrb[0].mxu0 %v138
    %v435 = vpop.f32.mrb[0].mxu0
    %v436 = vadd.f32 %v187, %v435
    %v437 = vpop.f32.mrb[0].mxu0
    %438 = vmatprep.mubr.f32.mxu0 0.0
    %439 = vmatmul.mubr.f32.gmra.mrb[0].mxu0 %v139
    %v440 = vpop.f32.mrb[0].mxu0
    %v441 = vadd.f32 %v187, %v440
    %v442 = vpop.f32.mrb[0].mxu0
    %443 = vmatprep.mubr.f32.mxu0 0.0
    %444 = vmatmul.mubr.f32.gmra.mrb[0].mxu0 %v140
    %v445 = vpop.f32.mrb[0].mxu0
    %v446 = vadd.f32 %v187, %v445
    %v447 = vpop.f32.mrb[0].mxu0
    %448 = vmatprep.mubr.f32.mxu0 0.0
    %449 = vmatmul.mubr.f32.gmra.mrb[0].mxu0 %v141
    %v450 = vpop.f32.mrb[0].mxu0
    %v451 = vadd.f32 %v187, %v450
    %v452 = vpop.f32.mrb[0].mxu0
    %453 = vmatprep.mubr.f32.mxu0 0.0
    %454 = vmatmul.mubr.f32.gmra.mrb[0].mxu0 %v142
    %v455 = vpop.f32.mrb[0].mxu0
    %v456 = vadd.f32 %v187, %v455
    %v457 = vpop.f32.mrb[0].mxu0
    %458 = vmatprep.mubr.f32.mxu0 0.0
    %459 = vmatmul.mubr.f32.gmra.mrb[0].mxu0 %v143
    %v460 = vpop.f32.mrb[0].mxu0
    %v461 = vadd.f32 %v187, %v460
    %v462 = vpop.f32.mrb[0].mxu0
    %463 = vmatprep.mubr.f32.mxu0 0.0
    %464 = vmatmul.mubr.f32.gmra.mrb[0].mxu0 %v144
    %v465 = vpop.f32.mrb[0].mxu0
    %v466 = vadd.f32 %v187, %v465
    %v467 = vpop.f32.mrb[0].mxu0
    %468 = vmatprep.mubr.f32.mxu0 0.0
    %469 = vmatmul.mubr.f32.gmra.mrb[0].mxu0 %v145
    %v470 = vpop.f32.mrb[0].mxu0
    %v471 = vadd.f32 %v187, %v470
    %v472 = vpop.f32.mrb[0].mxu0
    %473 = vmatprep.mubr.f32.mxu0 0.0
    %474 = vmatmul.mubr.f32.gmra.mrb[0].mxu0 %v146
    %v475 = vpop.f32.mrb[0].mxu0
    %v476 = vadd.f32 %v187, %v475
    %v477 = vpop.f32.mrb[0].mxu0
    %478 = vmatprep.mubr.f32.mxu0 0.0
    %479 = vmatmul.mubr.f32.gmra.mrb[0].mxu0 %v147
    %v480 = vpop.f32.mrb[0].mxu0
    %v481 = vadd.f32 %v187, %v480
    %v482 = vpop.f32.mrb[0].mxu0
    %483 = vmatprep.mubr.f32.mxu0 0.0
    %484 = vmatmul.mubr.f32.gmra.mrb[0].mxu0 %v148
    %v485 = vpop.f32.mrb[0].mxu0
    %v486 = vadd.f32 %v187, %v485
    %v487 = vpop.f32.mrb[0].mxu0
    %488 = vmatprep.mubr.f32.mxu0 0.0
    %489 = vmatmul.mubr.f32.gmra.mrb[0].mxu0 %v149
    %v490 = vpop.f32.mrb[0].mxu0
    %v491 = vadd.f32 %v187, %v490
    %v492 = vpop.f32.mrb[0].mxu0
    %493 = vmatprep.mubr.f32.mxu0 0.0
    %494 = vmatmul.mubr.f32.gmra.mrb[0].mxu0 %v150
    %v495 = vpop.f32.mrb[0].mxu0
    %v496 = vadd.f32 %v187, %v495
    %v497 = vpop.f32.mrb[0].mxu0
    %498 = vmatprep.mubr.f32.mxu0 0.0
    %499 = vmatmul.mubr.f32.gmra.mrb[0].mxu0 %v151
    %v500 = vpop.f32.mrb[0].mxu0
    %v501 = vadd.f32 %v187, %v500
    %v502 = vpop.f32.mrb[0].mxu0
    %503 = vmatprep.mubr.f32.mxu0 0.0
    %504 = vmatmul.mubr.f32.gmra.mrb[0].mxu0 %v152
    %v505 = vpop.f32.mrb[0].mxu0
    %v506 = vadd.f32 %v187, %v505
    %v507 = vpop.f32.mrb[0].mxu0
    %508 = vmatprep.mubr.f32.mxu0 0.0
    %509 = vmatmul.mubr.f32.gmra.mrb[0].mxu0 %v153
    %v510 = vpop.f32.mrb[0].mxu0
    %v511 = vadd.f32 %v187, %v510
    %v512 = vpop.f32.mrb[0].mxu0
    %513 = vmatprep.mubr.f32.mxu0 0.0
    %514 = vmatmul.mubr.f32.gmra.mrb[0].mxu0 %v154
    %v515 = vpop.f32.mrb[0].mxu0
    %v516 = vadd.f32 %v187, %v515
    %v517 = vpop.f32.mrb[0].mxu0
    %518 = vmatprep.mubr.f32.mxu0 0.0
    %519 = vmatmul.mubr.f32.gmra.mrb[0].mxu0 %v155
    %v520 = vpop.f32.mrb[0].mxu0
    %v521 = vadd.f32 %v187, %v520
    %v522 = vpop.f32.mrb[0].mxu0
    %523 = vmatprep.mubr.f32.mxu0 0.0
    %524 = vmatmul.mubr.f32.gmra.mrb[0].mxu0 %v156
    %v525 = vpop.f32.mrb[0].mxu0
    %v526 = vadd.f32 %v187, %v525
    %v527 = vpop.f32.mrb[0].mxu0
    %528 = vmatprep.mubr.f32.mxu0 0.0
    %529 = vmatmul.mubr.f32.gmra.mrb[0].mxu0 %v157
    %v530 = vpop.f32.mrb[0].mxu0
    %v531 = vadd.f32 %v187, %v530
    %v532 = vpop.f32.mrb[0].mxu0
    %533 = vmatprep.mubr.f32.mxu0 0.0
    %534 = vmatmul.mubr.f32.gmra.mrb[0].mxu0 %v158
    %v535 = vpop.f32.mrb[0].mxu0
    %v536 = vadd.f32 %v187, %v535
    %v537 = vpop.f32.mrb[0].mxu0
    %538 = vmatprep.mubr.f32.mxu0 0.0
    %539 = vmatmul.mubr.f32.gmra.mrb[0].mxu0 %v159
    %v540 = vpop.f32.mrb[0].mxu0
    %v541 = vadd.f32 %v187, %v540
    %v542 = vpop.f32.mrb[0].mxu0
    %543 = vmatprep.mubr.f32.mxu0 0.0
    %544 = vmatmul.mubr.f32.gmra.mrb[0].mxu0 %v160
    %v545 = vpop.f32.mrb[0].mxu0
    %v546 = vadd.f32 %v187, %v545
    %v547 = vpop.f32.mrb[0].mxu0
    %548 = vmatprep.mubr.f32.mxu0 0.0
    %549 = vmatmul.mubr.f32.gmra.mrb[0].mxu0 %v161
    %v550 = vpop.f32.mrb[0].mxu0
    %v551 = vadd.f32 %v187, %v550
    %v552 = vpop.f32.mrb[0].mxu0
    %553 = vmatprep.mubr.f32.mxu0 0.0
    %554 = vmatmul.mubr.f32.gmra.mrb[0].mxu0 %v162
    %v555 = vpop.f32.mrb[0].mxu0
    %v556 = vadd.f32 %v187, %v555
    %v557 = vpop.f32.mrb[0].mxu0
    %558 = vmatprep.mubr.f32.mxu0 0.0
    %559 = vmatmul.mubr.f32.gmra.mrb[0].mxu0 %v163
    %v560 = vpop.f32.mrb[0].mxu0
    %v561 = vadd.f32 %v187, %v560
    %v562 = vpop.f32.mrb[0].mxu0
    %563 = vmatprep.mubr.f32.mxu0 0.0
    %564 = vmatmul.mubr.f32.gmra.mrb[0].mxu0 %v164
    %v565 = vpop.f32.mrb[0].mxu0
    %v566 = vadd.f32 %v187, %v565
    %v567 = vpop.f32.mrb[0].mxu0
    %568 = vmatprep.mubr.f32.mxu0 0.0
    %569 = vmatmul.mubr.f32.gmra.mrb[0].mxu0 %v165
    %v570 = vpop.f32.mrb[0].mxu0
    %v571 = vadd.f32 %v187, %v570
    %v572 = vpop.f32.mrb[0].mxu0
    %573 = vdwg.mxu0
    %v574 = vmax.f32 %v256, 0.0
    %v575 = vmax.f32 %v261, 0.0
    %v576 = vmax.f32 %v266, 0.0
    %v577 = vmax.f32 %v271, 0.0
    %v578 = vmax.f32 %v276, 0.0
    %v579 = vmax.f32 %v281, 0.0
    %v580 = vmax.f32 %v286, 0.0
    %v581 = vmax.f32 %v291, 0.0
    %v582 = vmax.f32 %v296, 0.0
    %v583 = vmax.f32 %v301, 0.0
    %v584 = vmax.f32 %v306, 0.0
    %v585 = vmax.f32 %v311, 0.0
    %v586 = vmax.f32 %v316, 0.0
    %v587 = vmax.f32 %v321, 0.0
    %v588 = vmax.f32 %v326, 0.0
    %v589 = vmax.f32 %v331, 0.0
    %v590 = vmax.f32 %v336, 0.0
    %v591 = vmax.f32 %v341, 0.0
    %v592 = vmax.f32 %v346, 0.0
    %v593 = vmax.f32 %v351, 0.0
    %v594 = vmax.f32 %v356, 0.0
    %v595 = vmax.f32 %v361, 0.0
    %v596 = vmax.f32 %v366, 0.0
    %v597 = vmax.f32 %v371, 0.0
    %v598 = vmax.f32 %v376, 0.0
    %v599 = vmax.f32 %v381, 0.0
    %v600 = vmax.f32 %v386, 0.0
    %v601 = vmax.f32 %v391, 0.0
    %v602 = vmax.f32 %v396, 0.0
    %v603 = vmax.f32 %v401, 0.0
    %v604 = vmax.f32 %v406, 0.0
    %v605 = vmax.f32 %v411, 0.0
    %v606 = vmax.f32 %v416, 0.0
    %v607 = vmax.f32 %v421, 0.0
    %v608 = vmax.f32 %v426, 0.0
    %v609 = vmax.f32 %v431, 0.0
    %v610 = vmax.f32 %v436, 0.0
    %v611 = vmax.f32 %v441, 0.0
    %v612 = vmax.f32 %v446, 0.0
    %v613 = vmax.f32 %v451, 0.0
    %v614 = vmax.f32 %v456, 0.0
    %v615 = vmax.f32 %v461, 0.0
    %v616 = vmax.f32 %v466, 0.0
    %v617 = vmax.f32 %v471, 0.0
    %v618 = vmax.f32 %v476, 0.0
    %v619 = vmax.f32 %v481, 0.0
    %v620 = vmax.f32 %v486, 0.0
    %v621 = vmax.f32 %v491, 0.0
    %v622 = vmax.f32 %v496, 0.0
    %v623 = vmax.f32 %v501, 0.0
    %v624 = vmax.f32 %v506, 0.0
    %v625 = vmax.f32 %v511, 0.0
    %v626 = vmax.f32 %v516, 0.0
    %v627 = vmax.f32 %v521, 0.0
    %v628 = vmax.f32 %v526, 0.0
    %v629 = vmax.f32 %v531, 0.0
    %v630 = vmax.f32 %v536, 0.0
    %v631 = vmax.f32 %v541, 0.0
    %v632 = vmax.f32 %v546, 0.0
    %v633 = vmax.f32 %v551, 0.0
    %v634 = vmax.f32 %v556, 0.0
    %v635 = vmax.f32 %v561, 0.0
    %v636 = vmax.f32 %v566, 0.0
    %v637 = vmax.f32 %v571, 0.0
    %v638 = vld [vmem:[#allocation9] sm:$0xff]
    %v639 = vld [vmem:[#allocation9 + $0x8] sm:$0xff]
    %v640 = vld [vmem:[#allocation9 + $0x10] sm:$0xff]
    %v641 = vld [vmem:[#allocation9 + $0x18] sm:$0xff]
    %v642 = vld [vmem:[#allocation9 + $0x20] sm:$0xff]
    %v643 = vld [vmem:[#allocation9 + $0x28] sm:$0xff]
    %v644 = vld [vmem:[#allocation9 + $0x30] sm:$0xff]
    %v645 = vld [vmem:[#allocation9 + $0x38] sm:$0xff]
    %v646 = vld [vmem:[#allocation9 + $0x40] sm:$0xff]
    %v647 = vld [vmem:[#allocation9 + $0x48] sm:$0xff]
    %v648 = vld [vmem:[#allocation9 + $0x50] sm:$0xff]
    %v649 = vld [vmem:[#allocation9 + $0x58] sm:$0xff]
    %v650 = vld [vmem:[#allocation9 + $0x60] sm:$0xff]
    %v651 = vld [vmem:[#allocation9 + $0x68] sm:$0xff]
    %v652 = vld [vmem:[#allocation9 + $0x70] sm:$0xff]
    %v653 = vld [vmem:[#allocation9 + $0x78] sm:$0xff]
    %v654 = vld [vmem:[%s100] sm:$0x1]
    %v656 = vlaneseq
    %v657 = vshrl.u32 %v656, 7
    %v658 = vsub.s32 0, %v657
    %v659 = vrot.slane %v654, %v658
    %661 = vmatprep.subr.mxu0 0.0
    %662 = vmatpush1.msra.mxu0 %v638
    %663 = vmatprep.subr.mxu0 0.0
    %664 = vmatpush1.msra.mxu0 %v639
    %665 = vmatprep.subr.mxu0 0.0
    %666 = vmatpush1.msra.mxu0 %v640
    %667 = vmatprep.subr.mxu0 0.0
    %668 = vmatpush1.msra.mxu0 %v641
    %669 = vmatprep.subr.mxu0 0.0
    %670 = vmatpush1.msra.mxu0 %v642
    %671 = vmatprep.subr.mxu0 0.0
    %672 = vmatpush1.msra.mxu0 %v643
    %673 = vmatprep.subr.mxu0 0.0
    %674 = vmatpush1.msra.mxu0 %v644
    %675 = vmatprep.subr.mxu0 0.0
    %676 = vmatpush1.msra.mxu0 %v645
    %677 = vmatprep.subr.mxu0 0.0
    %678 = vmatpush1.msra.mxu0 %v646
    %679 = vmatprep.subr.mxu0 0.0
    %680 = vmatpush1.msra.mxu0 %v647
    %681 = vmatprep.subr.mxu0 0.0
    %682 = vmatpush1.msra.mxu0 %v648
    %683 = vmatprep.subr.mxu0 0.0
    %684 = vmatpush1.msra.mxu0 %v649
    %685 = vmatprep.subr.mxu0 0.0
    %686 = vmatpush1.msra.mxu0 %v650
    %687 = vmatprep.subr.mxu0 0.0
    %688 = vmatpush1.msra.mxu0 %v651
    %689 = vmatprep.subr.mxu0 0.0
    %690 = vmatpush1.msra.mxu0 %v652
    %691 = vmatprep.subr.mxu0 0.0
    %692 = vmatpush1.msra.mxu0 %v653
    %693 = vmatprep.subr.mxu0 0.0
    %694 = vmatpush1.msra.mxu0 0.0
    %695 = vmatprep.subr.mxu0 0.0
    %696 = vmatpush1.msra.mxu0 0.0
    %697 = vmatprep.subr.mxu0 0.0
    %698 = vmatpush1.msra.mxu0 0.0
    %699 = vmatprep.subr.mxu0 0.0
    %700 = vmatpush1.msra.mxu0 0.0
    %701 = vmatprep.subr.mxu0 0.0
    %702 = vmatpush1.msra.mxu0 0.0
    %703 = vmatprep.subr.mxu0 0.0
    %704 = vmatpush1.msra.mxu0 0.0
    %705 = vmatprep.subr.mxu0 0.0
    %706 = vmatpush1.msra.mxu0 0.0
    %707 = vmatprep.subr.mxu0 0.0
    %708 = vmatpush1.msra.mxu0 0.0
    %709 = vmatprep.subr.mxu0 0.0
    %710 = vmatpush1.msra.mxu0 0.0
    %711 = vmatprep.subr.mxu0 0.0
    %712 = vmatpush1.msra.mxu0 0.0
    %713 = vmatprep.subr.mxu0 0.0
    %714 = vmatpush1.msra.mxu0 0.0
    %715 = vmatprep.subr.mxu0 0.0
    %716 = vmatpush1.msra.mxu0 0.0
    %717 = vmatprep.subr.mxu0 0.0
    %718 = vmatpush1.msra.mxu0 0.0
    %719 = vmatprep.subr.mxu0 0.0
    %720 = vmatpush1.msra.mxu0 0.0
    %721 = vmatprep.subr.mxu0 0.0
    %722 = vmatpush1.msra.mxu0 0.0
    %723 = vmatprep.subr.mxu0 0.0
    %724 = vmatpush1.msra.mxu0 0.0
    %725 = vmatprep.mubr.f32.mxu0 0.0
    %726 = vmatmul.mubr.f32.gmra.mrb[0].mxu0 %v574
    %v727 = vpop.f32.mrb[0].mxu0
    %v728 = vadd.f32 %v659, %v727
    %v729 = vpop.f32.mrb[0].mxu0
    %730 = vmatprep.mubr.f32.mxu0 0.0
    %731 = vmatmul.mubr.f32.gmra.mrb[0].mxu0 %v575
    %v732 = vpop.f32.mrb[0].mxu0
    %v733 = vadd.f32 %v659, %v732
    %v734 = vpop.f32.mrb[0].mxu0
    %735 = vmatprep.mubr.f32.mxu0 0.0
    %736 = vmatmul.mubr.f32.gmra.mrb[0].mxu0 %v576
    %v737 = vpop.f32.mrb[0].mxu0
    %v738 = vadd.f32 %v659, %v737
    %v739 = vpop.f32.mrb[0].mxu0
    %740 = vmatprep.mubr.f32.mxu0 0.0
    %741 = vmatmul.mubr.f32.gmra.mrb[0].mxu0 %v577
    %v742 = vpop.f32.mrb[0].mxu0
    %v743 = vadd.f32 %v659, %v742
    %v744 = vpop.f32.mrb[0].mxu0
    %745 = vmatprep.mubr.f32.mxu0 0.0
    %746 = vmatmul.mubr.f32.gmra.mrb[0].mxu0 %v578
    %v747 = vpop.f32.mrb[0].mxu0
    %v748 = vadd.f32 %v659, %v747
    %v749 = vpop.f32.mrb[0].mxu0
    %750 = vmatprep.mubr.f32.mxu0 0.0
    %751 = vmatmul.mubr.f32.gmra.mrb[0].mxu0 %v579
    %v752 = vpop.f32.mrb[0].mxu0
    %v753 = vadd.f32 %v659, %v752
    %v754 = vpop.f32.mrb[0].mxu0
    %755 = vmatprep.mubr.f32.mxu0 0.0
    %756 = vmatmul.mubr.f32.gmra.mrb[0].mxu0 %v580
    %v757 = vpop.f32.mrb[0].mxu0
    %v758 = vadd.f32 %v659, %v757
    %v759 = vpop.f32.mrb[0].mxu0
    %760 = vmatprep.mubr.f32.mxu0 0.0
    %761 = vmatmul.mubr.f32.gmra.mrb[0].mxu0 %v581
    %v762 = vpop.f32.mrb[0].mxu0
    %v763 = vadd.f32 %v659, %v762
    %v764 = vpop.f32.mrb[0].mxu0
    %765 = vmatprep.mubr.f32.mxu0 0.0
    %766 = vmatmul.mubr.f32.gmra.mrb[0].mxu0 %v582
    %v767 = vpop.f32.mrb[0].mxu0
    %v768 = vadd.f32 %v659, %v767
    %v769 = vpop.f32.mrb[0].mxu0
    %770 = vmatprep.mubr.f32.mxu0 0.0
    %771 = vmatmul.mubr.f32.gmra.mrb[0].mxu0 %v583
    %v772 = vpop.f32.mrb[0].mxu0
    %v773 = vadd.f32 %v659, %v772
    %v774 = vpop.f32.mrb[0].mxu0
    %775 = vmatprep.mubr.f32.mxu0 0.0
    %776 = vmatmul.mubr.f32.gmra.mrb[0].mxu0 %v584
    %v777 = vpop.f32.mrb[0].mxu0
    %v778 = vadd.f32 %v659, %v777
    %v779 = vpop.f32.mrb[0].mxu0
    %780 = vmatprep.mubr.f32.mxu0 0.0
    %781 = vmatmul.mubr.f32.gmra.mrb[0].mxu0 %v585
    %v782 = vpop.f32.mrb[0].mxu0
    %v783 = vadd.f32 %v659, %v782
    %v784 = vpop.f32.mrb[0].mxu0
    %785 = vmatprep.mubr.f32.mxu0 0.0
    %786 = vmatmul.mubr.f32.gmra.mrb[0].mxu0 %v586
    %v787 = vpop.f32.mrb[0].mxu0
    %v788 = vadd.f32 %v659, %v787
    %v789 = vpop.f32.mrb[0].mxu0
    %790 = vmatprep.mubr.f32.mxu0 0.0
    %791 = vmatmul.mubr.f32.gmra.mrb[0].mxu0 %v587
    %v792 = vpop.f32.mrb[0].mxu0
    %v793 = vadd.f32 %v659, %v792
    %v794 = vpop.f32.mrb[0].mxu0
    %795 = vmatprep.mubr.f32.mxu0 0.0
    %796 = vmatmul.mubr.f32.gmra.mrb[0].mxu0 %v588
    %v797 = vpop.f32.mrb[0].mxu0
    %v798 = vadd.f32 %v659, %v797
    %v799 = vpop.f32.mrb[0].mxu0
    %800 = vmatprep.mubr.f32.mxu0 0.0
    %801 = vmatmul.mubr.f32.gmra.mrb[0].mxu0 %v589
    %v802 = vpop.f32.mrb[0].mxu0
    %v803 = vadd.f32 %v659, %v802
    %v804 = vpop.f32.mrb[0].mxu0
    %805 = vmatprep.mubr.f32.mxu0 0.0
    %806 = vmatmul.mubr.f32.gmra.mrb[0].mxu0 %v590
    %v807 = vpop.f32.mrb[0].mxu0
    %v808 = vadd.f32 %v659, %v807
    %v809 = vpop.f32.mrb[0].mxu0
    %810 = vmatprep.mubr.f32.mxu0 0.0
    %811 = vmatmul.mubr.f32.gmra.mrb[0].mxu0 %v591
    %v812 = vpop.f32.mrb[0].mxu0
    %v813 = vadd.f32 %v659, %v812
    %v814 = vpop.f32.mrb[0].mxu0
    %815 = vmatprep.mubr.f32.mxu0 0.0
    %816 = vmatmul.mubr.f32.gmra.mrb[0].mxu0 %v592
    %v817 = vpop.f32.mrb[0].mxu0
    %v818 = vadd.f32 %v659, %v817
    %v819 = vpop.f32.mrb[0].mxu0
    %820 = vmatprep.mubr.f32.mxu0 0.0
    %821 = vmatmul.mubr.f32.gmra.mrb[0].mxu0 %v593
    %v822 = vpop.f32.mrb[0].mxu0
    %v823 = vadd.f32 %v659, %v822
    %v824 = vpop.f32.mrb[0].mxu0
    %825 = vmatprep.mubr.f32.mxu0 0.0
    %826 = vmatmul.mubr.f32.gmra.mrb[0].mxu0 %v594
    %v827 = vpop.f32.mrb[0].mxu0
    %v828 = vadd.f32 %v659, %v827
    %v829 = vpop.f32.mrb[0].mxu0
    %830 = vmatprep.mubr.f32.mxu0 0.0
    %831 = vmatmul.mubr.f32.gmra.mrb[0].mxu0 %v595
    %v832 = vpop.f32.mrb[0].mxu0
    %v833 = vadd.f32 %v659, %v832
    %v834 = vpop.f32.mrb[0].mxu0
    %835 = vmatprep.mubr.f32.mxu0 0.0
    %836 = vmatmul.mubr.f32.gmra.mrb[0].mxu0 %v596
    %v837 = vpop.f32.mrb[0].mxu0
    %v838 = vadd.f32 %v659, %v837
    %v839 = vpop.f32.mrb[0].mxu0
    %840 = vmatprep.mubr.f32.mxu0 0.0
    %841 = vmatmul.mubr.f32.gmra.mrb[0].mxu0 %v597
    %v842 = vpop.f32.mrb[0].mxu0
    %v843 = vadd.f32 %v659, %v842
    %v844 = vpop.f32.mrb[0].mxu0
    %845 = vmatprep.mubr.f32.mxu0 0.0
    %846 = vmatmul.mubr.f32.gmra.mrb[0].mxu0 %v598
    %v847 = vpop.f32.mrb[0].mxu0
    %v848 = vadd.f32 %v659, %v847
    %v849 = vpop.f32.mrb[0].mxu0
    %850 = vmatprep.mubr.f32.mxu0 0.0
    %851 = vmatmul.mubr.f32.gmra.mrb[0].mxu0 %v599
    %v852 = vpop.f32.mrb[0].mxu0
    %v853 = vadd.f32 %v659, %v852
    %v854 = vpop.f32.mrb[0].mxu0
    %855 = vmatprep.mubr.f32.mxu0 0.0
    %856 = vmatmul.mubr.f32.gmra.mrb[0].mxu0 %v600
    %v857 = vpop.f32.mrb[0].mxu0
    %v858 = vadd.f32 %v659, %v857
    %v859 = vpop.f32.mrb[0].mxu0
    %860 = vmatprep.mubr.f32.mxu0 0.0
    %861 = vmatmul.mubr.f32.gmra.mrb[0].mxu0 %v601
    %v862 = vpop.f32.mrb[0].mxu0
    %v863 = vadd.f32 %v659, %v862
    %v864 = vpop.f32.mrb[0].mxu0
    %865 = vmatprep.mubr.f32.mxu0 0.0
    %866 = vmatmul.mubr.f32.gmra.mrb[0].mxu0 %v602
    %v867 = vpop.f32.mrb[0].mxu0
    %v868 = vadd.f32 %v659, %v867
    %v869 = vpop.f32.mrb[0].mxu0
    %870 = vmatprep.mubr.f32.mxu0 0.0
    %871 = vmatmul.mubr.f32.gmra.mrb[0].mxu0 %v603
    %v872 = vpop.f32.mrb[0].mxu0
    %v873 = vadd.f32 %v659, %v872
    %v874 = vpop.f32.mrb[0].mxu0
    %875 = vmatprep.mubr.f32.mxu0 0.0
    %876 = vmatmul.mubr.f32.gmra.mrb[0].mxu0 %v604
    %v877 = vpop.f32.mrb[0].mxu0
    %v878 = vadd.f32 %v659, %v877
    %v879 = vpop.f32.mrb[0].mxu0
    %880 = vmatprep.mubr.f32.mxu0 0.0
    %881 = vmatmul.mubr.f32.gmra.mrb[0].mxu0 %v605
    %v882 = vpop.f32.mrb[0].mxu0
    %v883 = vadd.f32 %v659, %v882
    %v884 = vpop.f32.mrb[0].mxu0
    %885 = vmatprep.mubr.f32.mxu0 0.0
    %886 = vmatmul.mubr.f32.gmra.mrb[0].mxu0 %v606
    %v887 = vpop.f32.mrb[0].mxu0
    %v888 = vadd.f32 %v659, %v887
    %v889 = vpop.f32.mrb[0].mxu0
    %890 = vmatprep.mubr.f32.mxu0 0.0
    %891 = vmatmul.mubr.f32.gmra.mrb[0].mxu0 %v607
    %v892 = vpop.f32.mrb[0].mxu0
    %v893 = vadd.f32 %v659, %v892
    %v894 = vpop.f32.mrb[0].mxu0
    %895 = vmatprep.mubr.f32.mxu0 0.0
    %896 = vmatmul.mubr.f32.gmra.mrb[0].mxu0 %v608
    %v897 = vpop.f32.mrb[0].mxu0
    %v898 = vadd.f32 %v659, %v897
    %v899 = vpop.f32.mrb[0].mxu0
    %900 = vmatprep.mubr.f32.mxu0 0.0
    %901 = vmatmul.mubr.f32.gmra.mrb[0].mxu0 %v609
    %v902 = vpop.f32.mrb[0].mxu0
    %v903 = vadd.f32 %v659, %v902
    %v904 = vpop.f32.mrb[0].mxu0
    %905 = vmatprep.mubr.f32.mxu0 0.0
    %906 = vmatmul.mubr.f32.gmra.mrb[0].mxu0 %v610
    %v907 = vpop.f32.mrb[0].mxu0
    %v908 = vadd.f32 %v659, %v907
    %v909 = vpop.f32.mrb[0].mxu0
    %910 = vmatprep.mubr.f32.mxu0 0.0
    %911 = vmatmul.mubr.f32.gmra.mrb[0].mxu0 %v611
    %v912 = vpop.f32.mrb[0].mxu0
    %v913 = vadd.f32 %v659, %v912
    %v914 = vpop.f32.mrb[0].mxu0
    %915 = vmatprep.mubr.f32.mxu0 0.0
    %916 = vmatmul.mubr.f32.gmra.mrb[0].mxu0 %v612
    %v917 = vpop.f32.mrb[0].mxu0
    %v918 = vadd.f32 %v659, %v917
    %v919 = vpop.f32.mrb[0].mxu0
    %920 = vmatprep.mubr.f32.mxu0 0.0
    %921 = vmatmul.mubr.f32.gmra.mrb[0].mxu0 %v613
    %v922 = vpop.f32.mrb[0].mxu0
    %v923 = vadd.f32 %v659, %v922
    %v924 = vpop.f32.mrb[0].mxu0
    %925 = vmatprep.mubr.f32.mxu0 0.0
    %926 = vmatmul.mubr.f32.gmra.mrb[0].mxu0 %v614
    %v927 = vpop.f32.mrb[0].mxu0
    %v928 = vadd.f32 %v659, %v927
    %v929 = vpop.f32.mrb[0].mxu0
    %930 = vmatprep.mubr.f32.mxu0 0.0
    %931 = vmatmul.mubr.f32.gmra.mrb[0].mxu0 %v615
    %v932 = vpop.f32.mrb[0].mxu0
    %v933 = vadd.f32 %v659, %v932
    %v934 = vpop.f32.mrb[0].mxu0
    %935 = vmatprep.mubr.f32.mxu0 0.0
    %936 = vmatmul.mubr.f32.gmra.mrb[0].mxu0 %v616
    %v937 = vpop.f32.mrb[0].mxu0
    %v938 = vadd.f32 %v659, %v937
    %v939 = vpop.f32.mrb[0].mxu0
    %940 = vmatprep.mubr.f32.mxu0 0.0
    %941 = vmatmul.mubr.f32.gmra.mrb[0].mxu0 %v617
    %v942 = vpop.f32.mrb[0].mxu0
    %v943 = vadd.f32 %v659, %v942
    %v944 = vpop.f32.mrb[0].mxu0
    %945 = vmatprep.mubr.f32.mxu0 0.0
    %946 = vmatmul.mubr.f32.gmra.mrb[0].mxu0 %v618
    %v947 = vpop.f32.mrb[0].mxu0
    %v948 = vadd.f32 %v659, %v947
    %v949 = vpop.f32.mrb[0].mxu0
    %950 = vmatprep.mubr.f32.mxu0 0.0
    %951 = vmatmul.mubr.f32.gmra.mrb[0].mxu0 %v619
    %v952 = vpop.f32.mrb[0].mxu0
    %v953 = vadd.f32 %v659, %v952
    %v954 = vpop.f32.mrb[0].mxu0
    %955 = vmatprep.mubr.f32.mxu0 0.0
    %956 = vmatmul.mubr.f32.gmra.mrb[0].mxu0 %v620
    %v957 = vpop.f32.mrb[0].mxu0
    %v958 = vadd.f32 %v659, %v957
    %v959 = vpop.f32.mrb[0].mxu0
    %960 = vmatprep.mubr.f32.mxu0 0.0
    %961 = vmatmul.mubr.f32.gmra.mrb[0].mxu0 %v621
    %v962 = vpop.f32.mrb[0].mxu0
    %v963 = vadd.f32 %v659, %v962
    %v964 = vpop.f32.mrb[0].mxu0
    %965 = vmatprep.mubr.f32.mxu0 0.0
    %966 = vmatmul.mubr.f32.gmra.mrb[0].mxu0 %v622
    %v967 = vpop.f32.mrb[0].mxu0
    %v968 = vadd.f32 %v659, %v967
    %v969 = vpop.f32.mrb[0].mxu0
    %970 = vmatprep.mubr.f32.mxu0 0.0
    %971 = vmatmul.mubr.f32.gmra.mrb[0].mxu0 %v623
    %v972 = vpop.f32.mrb[0].mxu0
    %v973 = vadd.f32 %v659, %v972
    %v974 = vpop.f32.mrb[0].mxu0
    %975 = vmatprep.mubr.f32.mxu0 0.0
    %976 = vmatmul.mubr.f32.gmra.mrb[0].mxu0 %v624
    %v977 = vpop.f32.mrb[0].mxu0
    %v978 = vadd.f32 %v659, %v977
    %v979 = vpop.f32.mrb[0].mxu0
    %980 = vmatprep.mubr.f32.mxu0 0.0
    %981 = vmatmul.mubr.f32.gmra.mrb[0].mxu0 %v625
    %v982 = vpop.f32.mrb[0].mxu0
    %v983 = vadd.f32 %v659, %v982
    %v984 = vpop.f32.mrb[0].mxu0
    %985 = vmatprep.mubr.f32.mxu0 0.0
    %986 = vmatmul.mubr.f32.gmra.mrb[0].mxu0 %v626
    %v987 = vpop.f32.mrb[0].mxu0
    %v988 = vadd.f32 %v659, %v987
    %v989 = vpop.f32.mrb[0].mxu0
    %990 = vmatprep.mubr.f32.mxu0 0.0
    %991 = vmatmul.mubr.f32.gmra.mrb[0].mxu0 %v627
    %v992 = vpop.f32.mrb[0].mxu0
    %v993 = vadd.f32 %v659, %v992
    %v994 = vpop.f32.mrb[0].mxu0
    %995 = vmatprep.mubr.f32.mxu0 0.0
    %996 = vmatmul.mubr.f32.gmra.mrb[0].mxu0 %v628
    %v997 = vpop.f32.mrb[0].mxu0
    %v998 = vadd.f32 %v659, %v997
    %v999 = vpop.f32.mrb[0].mxu0
    %1000 = vmatprep.mubr.f32.mxu0 0.0
    %1001 = vmatmul.mubr.f32.gmra.mrb[0].mxu0 %v629
    %v1002 = vpop.f32.mrb[0].mxu0
    %v1003 = vadd.f32 %v659, %v1002
    %v1004 = vpop.f32.mrb[0].mxu0
    %1005 = vmatprep.mubr.f32.mxu0 0.0
    %1006 = vmatmul.mubr.f32.gmra.mrb[0].mxu0 %v630
    %v1007 = vpop.f32.mrb[0].mxu0
    %v1008 = vadd.f32 %v659, %v1007
    %v1009 = vpop.f32.mrb[0].mxu0
    %1010 = vmatprep.mubr.f32.mxu0 0.0
    %1011 = vmatmul.mubr.f32.gmra.mrb[0].mxu0 %v631
    %v1012 = vpop.f32.mrb[0].mxu0
    %v1013 = vadd.f32 %v659, %v1012
    %v1014 = vpop.f32.mrb[0].mxu0
    %1015 = vmatprep.mubr.f32.mxu0 0.0
    %1016 = vmatmul.mubr.f32.gmra.mrb[0].mxu0 %v632
    %v1017 = vpop.f32.mrb[0].mxu0
    %v1018 = vadd.f32 %v659, %v1017
    %v1019 = vpop.f32.mrb[0].mxu0
    %1020 = vmatprep.mubr.f32.mxu0 0.0
    %1021 = vmatmul.mubr.f32.gmra.mrb[0].mxu0 %v633
    %v1022 = vpop.f32.mrb[0].mxu0
    %v1023 = vadd.f32 %v659, %v1022
    %v1024 = vpop.f32.mrb[0].mxu0
    %1025 = vmatprep.mubr.f32.mxu0 0.0
    %1026 = vmatmul.mubr.f32.gmra.mrb[0].mxu0 %v634
    %v1027 = vpop.f32.mrb[0].mxu0
    %v1028 = vadd.f32 %v659, %v1027
    %v1029 = vpop.f32.mrb[0].mxu0
    %1030 = vmatprep.mubr.f32.mxu0 0.0
    %1031 = vmatmul.mubr.f32.gmra.mrb[0].mxu0 %v635
    %v1032 = vpop.f32.mrb[0].mxu0
    %v1033 = vadd.f32 %v659, %v1032
    %v1034 = vpop.f32.mrb[0].mxu0
    %1035 = vmatprep.mubr.f32.mxu0 0.0
    %1036 = vmatmul.mubr.f32.gmra.mrb[0].mxu0 %v636
    %v1037 = vpop.f32.mrb[0].mxu0
    %v1038 = vadd.f32 %v659, %v1037
    %v1039 = vpop.f32.mrb[0].mxu0
    %1040 = vmatprep.mubr.f32.mxu0 0.0
    %1041 = vmatmul.mubr.f32.gmra.mrb[0].mxu0 %v637
    %v1042 = vpop.f32.mrb[0].mxu0
    %v1043 = vadd.f32 %v659, %v1042
    %v1044 = vpop.f32.mrb[0].mxu0
    %1045 = vdwg.mxu0
    %v1046 = vmax.f32 %v728, 0.0
    %v1047 = vmax.f32 %v733, 0.0
    %v1048 = vmax.f32 %v738, 0.0
    %v1049 = vmax.f32 %v743, 0.0
    %v1050 = vmax.f32 %v748, 0.0
    %v1051 = vmax.f32 %v753, 0.0
    %v1052 = vmax.f32 %v758, 0.0
    %v1053 = vmax.f32 %v763, 0.0
    %v1054 = vmax.f32 %v768, 0.0
    %v1055 = vmax.f32 %v773, 0.0
    %v1056 = vmax.f32 %v778, 0.0
    %v1057 = vmax.f32 %v783, 0.0
    %v1058 = vmax.f32 %v788, 0.0
    %v1059 = vmax.f32 %v793, 0.0
    %v1060 = vmax.f32 %v798, 0.0
    %v1061 = vmax.f32 %v803, 0.0
    %v1062 = vmax.f32 %v808, 0.0
    %v1063 = vmax.f32 %v813, 0.0
    %v1064 = vmax.f32 %v818, 0.0
    %v1065 = vmax.f32 %v823, 0.0
    %v1066 = vmax.f32 %v828, 0.0
    %v1067 = vmax.f32 %v833, 0.0
    %v1068 = vmax.f32 %v838, 0.0
    %v1069 = vmax.f32 %v843, 0.0
    %v1070 = vmax.f32 %v848, 0.0
    %v1071 = vmax.f32 %v853, 0.0
    %v1072 = vmax.f32 %v858, 0.0
    %v1073 = vmax.f32 %v863, 0.0
    %v1074 = vmax.f32 %v868, 0.0
    %v1075 = vmax.f32 %v873, 0.0
    %v1076 = vmax.f32 %v878, 0.0
    %v1077 = vmax.f32 %v883, 0.0
    %v1078 = vmax.f32 %v888, 0.0
    %v1079 = vmax.f32 %v893, 0.0
    %v1080 = vmax.f32 %v898, 0.0
    %v1081 = vmax.f32 %v903, 0.0
    %v1082 = vmax.f32 %v908, 0.0
    %v1083 = vmax.f32 %v913, 0.0
    %v1084 = vmax.f32 %v918, 0.0
    %v1085 = vmax.f32 %v923, 0.0
    %v1086 = vmax.f32 %v928, 0.0
    %v1087 = vmax.f32 %v933, 0.0
    %v1088 = vmax.f32 %v938, 0.0
    %v1089 = vmax.f32 %v943, 0.0
    %v1090 = vmax.f32 %v948, 0.0
    %v1091 = vmax.f32 %v953, 0.0
    %v1092 = vmax.f32 %v958, 0.0
    %v1093 = vmax.f32 %v963, 0.0
    %v1094 = vmax.f32 %v968, 0.0
    %v1095 = vmax.f32 %v973, 0.0
    %v1096 = vmax.f32 %v978, 0.0
    %v1097 = vmax.f32 %v983, 0.0
    %v1098 = vmax.f32 %v988, 0.0
    %v1099 = vmax.f32 %v993, 0.0
    %v1100 = vmax.f32 %v998, 0.0
    %v1101 = vmax.f32 %v1003, 0.0
    %v1102 = vmax.f32 %v1008, 0.0
    %v1103 = vmax.f32 %v1013, 0.0
    %v1104 = vmax.f32 %v1018, 0.0
    %v1105 = vmax.f32 %v1023, 0.0
    %v1106 = vmax.f32 %v1028, 0.0
    %v1107 = vmax.f32 %v1033, 0.0
    %v1108 = vmax.f32 %v1038, 0.0
    %v1109 = vmax.f32 %v1043, 0.0
    %1110 = vst [vmem:[#allocation10] sm:$0xff] %v1046
    %1111 = vst [vmem:[#allocation10 + $0x8] sm:$0xff] %v1047
    %1112 = vst [vmem:[#allocation10 + $0x10] sm:$0xff] %v1048
    %1113 = vst [vmem:[#allocation10 + $0x18] sm:$0xff] %v1049
    %1114 = vst [vmem:[#allocation10 + $0x20] sm:$0xff] %v1050
    %1115 = vst [vmem:[#allocation10 + $0x28] sm:$0xff] %v1051
    %1116 = vst [vmem:[#allocation10 + $0x30] sm:$0xff] %v1052
    %1117 = vst [vmem:[#allocation10 + $0x38] sm:$0xff] %v1053
    %1118 = vst [vmem:[#allocation10 + $0x40] sm:$0xff] %v1054
    %1119 = vst [vmem:[#allocation10 + $0x48] sm:$0xff] %v1055
    %1120 = vst [vmem:[#allocation10 + $0x50] sm:$0xff] %v1056
    %1121 = vst [vmem:[#allocation10 + $0x58] sm:$0xff] %v1057
    %1122 = vst [vmem:[#allocation10 + $0x60] sm:$0xff] %v1058
    %1123 = vst [vmem:[#allocation10 + $0x68] sm:$0xff] %v1059
    %1124 = vst [vmem:[#allocation10 + $0x70] sm:$0xff] %v1060
    %1125 = vst [vmem:[#allocation10 + $0x78] sm:$0xff] %v1061
    %1126 = vst [vmem:[#allocation10 + $0x80] sm:$0xff] %v1062
    %1127 = vst [vmem:[#allocation10 + $0x88] sm:$0xff] %v1063
    %1128 = vst [vmem:[#allocation10 + $0x90] sm:$0xff] %v1064
    %1129 = vst [vmem:[#allocation10 + $0x98] sm:$0xff] %v1065
    %1130 = vst [vmem:[#allocation10 + $0xa0] sm:$0xff] %v1066
    %1131 = vst [vmem:[#allocation10 + $0xa8] sm:$0xff] %v1067
    %1132 = vst [vmem:[#allocation10 + $0xb0] sm:$0xff] %v1068
    %1133 = vst [vmem:[#allocation10 + $0xb8] sm:$0xff] %v1069
    %1134 = vst [vmem:[#allocation10 + $0xc0] sm:$0xff] %v1070
    %1135 = vst [vmem:[#allocation10 + $0xc8] sm:$0xff] %v1071
    %1136 = vst [vmem:[#allocation10 + $0xd0] sm:$0xff] %v1072
    %1137 = vst [vmem:[#allocation10 + $0xd8] sm:$0xff] %v1073
    %1138 = vst [vmem:[#allocation10 + $0xe0] sm:$0xff] %v1074
    %1139 = vst [vmem:[#allocation10 + $0xe8] sm:$0xff] %v1075
    %1140 = vst [vmem:[#allocation10 + $0xf0] sm:$0xff] %v1076
    %1141 = vst [vmem:[#allocation10 + $0xf8] sm:$0xff] %v1077
    %1142 = vst [vmem:[#allocation10 + $0x100] sm:$0xff] %v1078
    %1143 = vst [vmem:[#allocation10 + $0x108] sm:$0xff] %v1079
    %1144 = vst [vmem:[#allocation10 + $0x110] sm:$0xff] %v1080
    %1145 = vst [vmem:[#allocation10 + $0x118] sm:$0xff] %v1081
    %1146 = vst [vmem:[#allocation10 + $0x120] sm:$0xff] %v1082
    %1147 = vst [vmem:[#allocation10 + $0x128] sm:$0xff] %v1083
    %1148 = vst [vmem:[#allocation10 + $0x130] sm:$0xff] %v1084
    %1149 = vst [vmem:[#allocation10 + $0x138] sm:$0xff] %v1085
    %1150 = vst [vmem:[#allocation10 + $0x140] sm:$0xff] %v1086
    %1151 = vst [vmem:[#allocation10 + $0x148] sm:$0xff] %v1087
    %1152 = vst [vmem:[#allocation10 + $0x150] sm:$0xff] %v1088
    %1153 = vst [vmem:[#allocation10 + $0x158] sm:$0xff] %v1089
    %1154 = vst [vmem:[#allocation10 + $0x160] sm:$0xff] %v1090
    %1155 = vst [vmem:[#allocation10 + $0x168] sm:$0xff] %v1091
    %1156 = vst [vmem:[#allocation10 + $0x170] sm:$0xff] %v1092
    %1157 = vst [vmem:[#allocation10 + $0x178] sm:$0xff] %v1093
    %1158 = vst [vmem:[#allocation10 + $0x180] sm:$0xff] %v1094
    %1159 = vst [vmem:[#allocation10 + $0x188] sm:$0xff] %v1095
    %1160 = vst [vmem:[#allocation10 + $0x190] sm:$0xff] %v1096
    %1161 = vst [vmem:[#allocation10 + $0x198] sm:$0xff] %v1097
    %1162 = vst [vmem:[#allocation10 + $0x1a0] sm:$0xff] %v1098
    %1163 = vst [vmem:[#allocation10 + $0x1a8] sm:$0xff] %v1099
    %1164 = vst [vmem:[#allocation10 + $0x1b0] sm:$0xff] %v1100
    %1165 = vst [vmem:[#allocation10 + $0x1b8] sm:$0xff] %v1101
    %1166 = vst [vmem:[#allocation10 + $0x1c0] sm:$0xff] %v1102
    %1167 = vst [vmem:[#allocation10 + $0x1c8] sm:$0xff] %v1103
    %1168 = vst [vmem:[#allocation10 + $0x1d0] sm:$0xff] %v1104
    %1169 = vst [vmem:[#allocation10 + $0x1d8] sm:$0xff] %v1105
    %1170 = vst [vmem:[#allocation10 + $0x1e0] sm:$0xff] %v1106
    %1171 = vst [vmem:[#allocation10 + $0x1e8] sm:$0xff] %v1107
    %1172 = vst [vmem:[#allocation10 + $0x1f0] sm:$0xff] %v1108
    %1173 = vst [vmem:[#allocation10 + $0x1f8] sm:$0xff] %v1109
    // Predicated region
    $region34: #{tpu_custom_call.1} parent=1 // pred_check
      _
    $region35: #{tpu_custom_call.1} parent=1 // pred_check_branch
      %1175 = sbr.rel (0) target = $region37
    $region36: #{tpu_custom_call.1} parent=1 // pred_region
      %s1177 = ssub.s32 8192, 8192
      %1178 = vsyncadd [#allocation6], %s1177
      %s1179 = sshll.u32 [#allocation10], 4
      %s1180 = int_to_ptr.vmem [resolvable:$true] %s1179
      %1185 = dma.vmem_to_hbm [thread:$0]  %s1180, 8192, %s6, [#allocation6], 128, 128, 8
    $region37: #{tpu_custom_call.1} parent=1 // pred_fallthru
      _
    // Predicated region
    $region38: #{tpu_custom_call.1} parent=1 // pred_check
      _
    $region39: #{tpu_custom_call.1} parent=1 // pred_check_branch
      %1187 = sbr.rel (0) target = $region41
    $region40: #{tpu_custom_call.1} parent=1 // pred_region
      %1188 = dma.done [#allocation6], 8192
    $region41: #{tpu_custom_call.1} parent=1 // pred_fallthru
      _
    %1189 = vsyncpa [#allocation5], 1
    %1190 = vsyncpa [#allocation8], 1
    %1191 = vsyncpa [#allocation6], 1

</llo_original>
